<compile_context>
chip_gen: v7x
topology: tpu7x:2x2x1
jax: 0.10.0
libtpu: 0.0.40
codegen_flags: <defaults>
</compile_context>

<pallas_src>
from typing import NamedTuple, Optional

import jax
import jax.numpy as jnp
from jax.experimental import pallas as pl
from jax.experimental.pallas import tpu as pltpu


def _round_up(x, m):
    return ((x + m - 1) // m) * m


def _largest_divisor_leq(n, cap):
    cap = max(1, min(cap, n))
    d = cap
    while n % d:
        d -= 1
    return d


def _tpu_defaults():
    kind = ""
    try:
        kind = jax.devices()[0].device_kind.lower()
    except Exception:
        pass
    if "v7" in kind or "7x" in kind:
        # v7x: 64 MiB physical VMEM, 2 TensorCores -> smaller tile budget,
        # explicit (sub-physical) vmem limit, and force >=2 parallel blocks.
        return dict(tm=256, tn=1024, tk=1024, vmem=48 * 1024 * 1024, two_blocks=True)
    if "v5e" in kind or "v5 lite" in kind or "v5lite" in kind:
        # v5e: scoped default is 16 MiB -> must raise vmem_limit_bytes; larger
        # tk amortizes the f32 accumulator RMW (only 1 vst slot).
        return dict(tm=256, tn=512, tk=2048, vmem=96 * 1024 * 1024, two_blocks=False)
    # v6e (default): 128 MiB physical, 32 MiB scoped default.
    return dict(tm=256, tn=1024, tk=2048, vmem=96 * 1024 * 1024, two_blocks=False)


def _linear_lora_kernel(x_ref, wt_ref, bias_ref, xa_ref, b_ref, o_ref, acc_ref):
    k = pl.program_id(2)

    @pl.when(k == 0)
    def _():
        acc_ref[...] = jnp.zeros_like(acc_ref)

    # Base path: accumulate x_tile @ W^T_tile into the f32 accumulator (MXU).
    acc_ref[...] += jnp.dot(x_ref[...], wt_ref[...],
                            preferred_element_type=jnp.float32)

    @pl.when(k == pl.num_programs(2) - 1)
    def _():
        # LoRA up-projection once per (i, j): xa is already alpha * (x @ A),
        # kept in the params' native dtype (bf16 fast path, f32 accumulation).
        lora = jnp.dot(xa_ref[...], b_ref[...],
                       preferred_element_type=jnp.float32)          # (tm, tn)
        o_ref[...] = (acc_ref[...] + bias_ref[...] + lora).astype(o_ref.dtype)


class LoRAParams(NamedTuple):
    wt: jax.Array      # [Kp, Np]  pre-transposed, lane-padded nn.Linear weight
    bias2: jax.Array   # [1, Np]   f32 (added to the f32 accumulator)
    A: jax.Array       # [Kp, rank]
    B: jax.Array       # [rank, Np]
    in_dim: int
    out_dim: int
    rank: int
    compute_dtype: Optional[jnp.dtype]


def prepare_lora_params(w, bias, A, B, *, compute_dtype=None):
    """One-time parameter prep: transpose W, zero-pad all params to
    128-aligned [Kp, Np] (so no per-call weight padding), optionally cast the
    MXU operands to a lower-precision compute dtype (e.g. bf16)."""
    out_dim, in_dim = w.shape
    rank = A.shape[1]
    Kp = _round_up(in_dim, 128)
    Np = _round_up(out_dim, 128)

    wt = jnp.transpose(w)                                       # [in_dim, out_dim]
    wt = jnp.pad(wt, ((0, Kp - in_dim), (0, Np - out_dim)))
    bias2 = jnp.pad(bias.reshape(1, -1).astype(jnp.float32),
                    ((0, 0), (0, Np - out_dim)))
    A = jnp.pad(A, ((0, Kp - in_dim), (0, 0)))
    B = jnp.pad(B, ((0, 0), (0, Np - out_dim)))
    if compute_dtype is not None:
        wt = wt.astype(compute_dtype)
        A = A.astype(compute_dtype)
        B = B.astype(compute_dtype)
        # TODO(synk): add an fp8 W^T path for v7x decode (fp8 MXU, f32 acc).
    return LoRAParams(wt, bias2, A, B, int(in_dim), int(out_dim), int(rank),
                      compute_dtype)


def linear_with_lora(x, params: LoRAParams, alpha, *,
                     tm=None, tn=None, tk=None, vmem_limit_bytes=None):
    """x: [..., in_dim]; params: from prepare_lora_params."""
    cfg = _tpu_defaults()
    tm = cfg["tm"] if tm is None else tm
    tn = cfg["tn"] if tn is None else tn
    tk = cfg["tk"] if tk is None else tk
    vmem = cfg["vmem"] if vmem_limit_bytes is None else vmem_limit_bytes

    in_dim, out_dim, rank = params.in_dim, params.out_dim, params.rank
    Kp, Np = params.wt.shape
    cdt = params.compute_dtype
    out_dtype = x.dtype
    lead = x.shape[:-1]

    x2 = x.reshape(-1, in_dim)
    if cdt is not None:
        x2 = x2.astype(cdt)
    M = x2.shape[0]

    # dtype-aware sublane minimum (bf16 packs (16,128) per vreg).
    sub = 16 if x2.dtype == jnp.bfloat16 else 8
    tm = min(tm, _round_up(M, sub))
    Mp = _round_up(M, tm)
    m_blocks = Mp // tm

    # tn / tk are divisors of the 128-rounded dims: never stream dead weight.
    n_blk, k_blk = Np // 128, Kp // 128
    tn_blocks = _largest_divisor_leq(n_blk, max(1, tn // 128))
    tk_blocks = _largest_divisor_leq(k_blk, max(1, tk // 128))
    # v7x: guarantee >= 2 blocks along a parallel axis so both TCs are used.
    if cfg["two_blocks"] and m_blocks == 1 and n_blk >= 2 and n_blk // tn_blocks < 2:
        tn_blocks = _largest_divisor_leq(n_blk, n_blk // 2)
    tn = tn_blocks * 128
    tk = tk_blocks * 128

    # Only the activation is padded per call (params were padded at setup).
    if (Mp, Kp) != (M, in_dim):
        x2 = jnp.pad(x2, ((0, Mp - M), (0, Kp - in_dim)))

    # LoRA down-projection hoisted out of the kernel (tiny [M, rank] output);
    # alpha is folded in here, so changing alpha never recompiles the kernel.
    xa = jnp.dot(x2, params.A, preferred_element_type=jnp.float32)
    xa = (xa * jnp.float32(alpha)).astype(params.B.dtype)

    grid = (m_blocks, Np // tn, Kp // tk)

    # Decode-shaped calls (1 M block, several K steps) are pure W^T streaming:
    # deepen buffering on the dominant weight stream.
    wt_spec_kwargs = {}
    if grid[0] == 1 and grid[2] >= 3:
        wt_spec_kwargs = dict(pipeline_mode=pl.Buffered(3))
    wt_spec = pl.BlockSpec((tk, tn), lambda i, j, k: (k, j), **wt_spec_kwargs)

    out = pl.pallas_call(
        _linear_lora_kernel,
        out_shape=jax.ShapeDtypeStruct((Mp, Np), out_dtype),
        grid_spec=pltpu.PrefetchScalarGridSpec(
            num_scalar_prefetch=0,
            grid=grid,
            in_specs=[
                pl.BlockSpec((tm, tk), lambda i, j, k: (i, k)),     # x tile
                wt_spec,                                            # W^T tile
                pl.BlockSpec((1, tn), lambda i, j, k: (0, j)),      # bias tile
                pl.BlockSpec((tm, rank), lambda i, j, k: (i, 0)),   # xa = alpha*(x@A)
                pl.BlockSpec((rank, tn), lambda i, j, k: (0, j)),   # B tile
            ],
            out_specs=pl.BlockSpec((tm, tn), lambda i, j, k: (i, j)),
            scratch_shapes=[
                pltpu.VMEM((tm, tn), jnp.float32),   # f32 base accumulator
            ],
        ),
        compiler_params=pltpu.CompilerParams(
            dimension_semantics=("parallel", "parallel", "arbitrary"),
            vmem_limit_bytes=vmem),
    )(x2, params.wt, params.bias2, xa, params.B)

    out = out[:M, :out_dim]
    return out.reshape(*lead, out_dim)


if __name__ == "__main__":
    # Small shapes consistent with the module: tokens = batch * seq.
    batch, seq = 2, 8
    in_dim, out_dim, rank, alpha = 32, 32, 4, 2.0

    key = jax.random.PRNGKey(0)
    kx, kw, kb, ka, kbb = jax.random.split(key, 5)

    x = jax.random.normal(kx, (batch, seq, in_dim), dtype=jnp.float32)

    # nn.Linear params (deterministic synthetic init)
    w = jax.random.normal(kw, (out_dim, in_dim), dtype=jnp.float32) * 0.05
    bias = jax.random.normal(kb, (out_dim,), dtype=jnp.float32) * 0.05

    # LoRA params. PyTorch init has B = zeros; use a small random B so the
    # LoRA path contributes non-trivially for numeric verification.
    std_dev = 1.0 / jnp.sqrt(jnp.float32(rank))
    A = jax.random.normal(ka, (in_dim, rank), dtype=jnp.float32) * std_dev
    B = jax.random.normal(kbb, (rank, out_dim), dtype=jnp.float32) * 0.1

    # Pure-JAX reference
    ref = x @ w.T + bias + alpha * ((x @ A) @ B)

    # --- f32 compute path (tight tolerance) ---
    params = prepare_lora_params(w, bias, A, B)
    out = linear_with_lora(x, params, alpha)
    out = jax.block_until_ready(out)
    assert out.shape == (batch, seq, out_dim)
    assert jnp.allclose(out, ref, atol=1e-4, rtol=1e-4), "f32 mismatch vs reference"

    # --- bf16 MXU operands with f32 accumulation (loose tolerance) ---
    params16 = prepare_lora_params(w, bias, A, B, compute_dtype=jnp.bfloat16)
    out16 = linear_with_lora(x, params16, alpha)
    out16 = jax.block_until_ready(out16)
    assert jnp.allclose(out16, ref, atol=5e-2, rtol=5e-2), "bf16 mismatch vs reference"

    print("KERNEL_OK")
</pallas_src>

<mosaic_0001>
module attributes {stable_mosaic.version = 11 : i64} {
  func.func @_linear_lora_kernel(%arg0: i32, %arg1: i32, %arg2: i32, %arg3: memref<16x128xf32, #tpu.memory_space<vmem>>, %arg4: memref<128x128xf32, #tpu.memory_space<vmem>>, %arg5: memref<1x128xf32, #tpu.memory_space<vmem>>, %arg6: memref<16x4xf32, #tpu.memory_space<vmem>>, %arg7: memref<4x128xf32, #tpu.memory_space<vmem>>, %arg8: memref<16x128xf32, #tpu.memory_space<vmem>>, %arg9: memref<16x128xf32, #tpu.memory_space<vmem>>) attributes {dimension_semantics = [#tpu.dimension_semantics<parallel>, #tpu.dimension_semantics<parallel>, #tpu.dimension_semantics<arbitrary>], iteration_bounds = array<i64: 1, 1, 1>, scalar_prefetch = 0 : i64, scratch_operands = 1 : i64, tpu.core_type = #tpu.core_type<tc>, window_params = [{transform_indices = @transform_0, window_bounds = array<i64: 16, 128>}, {transform_indices = @transform_1, window_bounds = array<i64: 128, 128>}, {transform_indices = @transform_2, window_bounds = array<i64: 1, 128>}, {transform_indices = @transform_3, window_bounds = array<i64: 16, 4>}, {transform_indices = @transform_4, window_bounds = array<i64: 4, 128>}, {transform_indices = @transform_5, window_bounds = array<i64: 16, 128>}]} {
    %c0_i32 = arith.constant 0 : i32
    %0 = arith.cmpi eq, %arg2, %c0_i32 : i32
    %1 = arith.extui %0 : i1 to i32
    %c0_i32_0 = arith.constant 0 : i32
    %2 = arith.cmpi ne, %1, %c0_i32_0 : i32
    scf.if %2 {
      %cst_10 = arith.constant 0.000000e+00 : f32
      %12 = vector.broadcast %cst_10 : f32 to vector<16x128xf32>
      %c0_11 = arith.constant 0 : index
      %c0_12 = arith.constant 0 : index
      %13 = vector.load %arg9[%c0_11, %c0_12] : memref<16x128xf32, #tpu.memory_space<vmem>>, vector<16x128xf32>
      tpu.vector_store %arg9[%c0_11, %c0_12], %12 {strides = array<i32>} : memref<16x128xf32, #tpu.memory_space<vmem>>, vector<16x128xf32>,
    } else {
    }
    %c0 = arith.constant 0 : index
    %c0_1 = arith.constant 0 : index
    %3 = vector.load %arg9[%c0, %c0_1] : memref<16x128xf32, #tpu.memory_space<vmem>>, vector<16x128xf32>
    %c0_2 = arith.constant 0 : index
    %c0_3 = arith.constant 0 : index
    %4 = vector.load %arg3[%c0_2, %c0_3] : memref<16x128xf32, #tpu.memory_space<vmem>>, vector<16x128xf32>
    %c0_4 = arith.constant 0 : index
    %c0_5 = arith.constant 0 : index
    %5 = vector.load %arg4[%c0_4, %c0_5] : memref<128x128xf32, #tpu.memory_space<vmem>>, vector<128x128xf32>
    %cst = arith.constant dense<0.000000e+00> : vector<16x128xf32>
    %6 = tpu.matmul %4, %5, %cst {dimension_numbers = #tpu.dot_dimension_numbers<[1], [0], [0], [1], [0, 0, 1, 1], [], []>} : vector<16x128xf32>, vector<128x128xf32>, vector<16x128xf32> -> vector<16x128xf32>
    %7 = arith.addf %3, %6 : vector<16x128xf32>
    %c0_6 = arith.constant 0 : index
    %c0_7 = arith.constant 0 : index
    %8 = vector.load %arg9[%c0_6, %c0_7] : memref<16x128xf32, #tpu.memory_space<vmem>>, vector<16x128xf32>
    tpu.vector_store %arg9[%c0_6, %c0_7], %7 {strides = array<i32>} : memref<16x128xf32, #tpu.memory_space<vmem>>, vector<16x128xf32>,
    %c0_i32_8 = arith.constant 0 : i32
    %9 = arith.cmpi eq, %arg2, %c0_i32_8 : i32
    %10 = arith.extui %9 : i1 to i32
    %c0_i32_9 = arith.constant 0 : i32
    %11 = arith.cmpi ne, %10, %c0_i32_9 : i32
    scf.if %11 {
      %c0_10 = arith.constant 0 : index
      %c0_11 = arith.constant 0 : index
      %12 = vector.load %arg6[%c0_10, %c0_11] : memref<16x4xf32, #tpu.memory_space<vmem>>, vector<16x4xf32>
      %c0_12 = arith.constant 0 : index
      %c0_13 = arith.constant 0 : index
      %13 = vector.load %arg7[%c0_12, %c0_13] : memref<4x128xf32, #tpu.memory_space<vmem>>, vector<4x128xf32>
      %cst_14 = arith.constant dense<0.000000e+00> : vector<16x128xf32>
      %14 = tpu.matmul %12, %13, %cst_14 {dimension_numbers = #tpu.dot_dimension_numbers<[1], [0], [0], [1], [0, 0, 1, 1], [], []>} : vector<16x4xf32>, vector<4x128xf32>, vector<16x128xf32> -> vector<16x128xf32>
      %c0_15 = arith.constant 0 : index
      %c0_16 = arith.constant 0 : index
      %15 = vector.load %arg9[%c0_15, %c0_16] : memref<16x128xf32, #tpu.memory_space<vmem>>, vector<16x128xf32>
      %c0_17 = arith.constant 0 : index
      %c0_18 = arith.constant 0 : index
      %16 = vector.load %arg5[%c0_17, %c0_18] : memref<1x128xf32, #tpu.memory_space<vmem>>, vector<1x128xf32>
      %17 = vector.broadcast %16 : vector<1x128xf32> to vector<16x128xf32>
      %18 = arith.addf %15, %17 : vector<16x128xf32>
      %19 = arith.addf %18, %14 : vector<16x128xf32>
      %c0_19 = arith.constant 0 : index
      %c0_20 = arith.constant 0 : index
      %20 = vector.load %arg8[%c0_19, %c0_20] : memref<16x128xf32, #tpu.memory_space<vmem>>, vector<16x128xf32>
      tpu.vector_store %arg8[%c0_19, %c0_20], %19 {strides = array<i32>} : memref<16x128xf32, #tpu.memory_space<vmem>>, vector<16x128xf32>,
    } else {
    }
    return
  }
  func.func @transform_0(%arg0: i32, %arg1: i32, %arg2: i32) -> (i32, i32) {
    %c0_i32 = arith.constant 0 : i32
    return %arg0, %arg2 : i32, i32
  }
  func.func @transform_1(%arg0: i32, %arg1: i32, %arg2: i32) -> (i32, i32) {
    %c0_i32 = arith.constant 0 : i32
    return %arg2, %arg1 : i32, i32
  }
  func.func @transform_2(%arg0: i32, %arg1: i32, %arg2: i32) -> (i32, i32) {
    %c0_i32 = arith.constant 0 : i32
    %c0_i32_0 = arith.constant 0 : i32
    return %c0_i32, %arg1 : i32, i32
  }
  func.func @transform_3(%arg0: i32, %arg1: i32, %arg2: i32) -> (i32, i32) {
    %c0_i32 = arith.constant 0 : i32
    %c0_i32_0 = arith.constant 0 : i32
    return %arg0, %c0_i32 : i32, i32
  }
  func.func @transform_4(%arg0: i32, %arg1: i32, %arg2: i32) -> (i32, i32) {
    %c0_i32 = arith.constant 0 : i32
    %c0_i32_0 = arith.constant 0 : i32
    return %c0_i32, %arg1 : i32, i32
  }
  func.func @transform_5(%arg0: i32, %arg1: i32, %arg2: i32) -> (i32, i32) {
    %c0_i32 = arith.constant 0 : i32
    return %arg0, %arg1 : i32, i32
  }
}

</mosaic_0001>

<llo_original>
// kernel: tpu_custom_call.1
$region0: #{tpu_custom_call.1}
  #allocation0 [shape = 'u32[]', space=smem, size = 0x4, offset = 0x4, fixed_abs, tag = 'smem constant byte address 0x4 - core index']
  #allocation1 [shape = 'u32[144,128]{1,0:T(1,128)}', space=vmem, size = 0x12000, scoped, tag = 'internal scratch']
  #allocation2 [shape = 'f32[16,128]{1,0:T(8,128)}', space=vmem, size = 0x2000, scoped, tag = 'scratch operand']
  %s0 = inlined_call_operand.hbm [shape: f32[16,128], index: 0, kind: input, shape index: {}]
  %s1 = inlined_call_operand.hbm [shape: f32[128,128], index: 1, kind: input, shape index: {}]
  %s2 = inlined_call_operand.hbm [shape: f32[1,128], index: 2, kind: input, shape index: {}]
  %s3 = inlined_call_operand.hbm [shape: f32[16,4], index: 3, kind: input, shape index: {}]
  %s4 = inlined_call_operand.hbm [shape: f32[4,128], index: 4, kind: input, shape index: {}]
  %s5 = inlined_call_operand.hbm [shape: f32[16,128], index: 5, kind: output, shape index: {}]
  %s6 = sld [smem:[#allocation0]]
  $region58: #{tpu_custom_call.1} parent=0
    _
  %s8 = ssub.s32 1, %s6
  %s9 = scalar_select 0, %s8, %s6
  $region1: #{tpu_custom_call.1} parent=0
    #allocation3 [shape = 'u8[8192]{0}', space=vmem, size = 0x2000, scoped, tag = 'input window, operand 0, single buffered']
    #allocation4 [shape = 's32[1]{0}', space=sflag, size = 0x4, scoped, tag = 'scoped memory for tpu_custom_call.1']
    #allocation5 [shape = 's32[1]{0}', space=sflag, size = 0x4, scoped, tag = 'scoped memory for tpu_custom_call.1']
    #allocation6 [shape = 'u8[65536]{0}', space=vmem, size = 0x10000, scoped, tag = 'input window, operand 1, single buffered']
    #allocation7 [shape = 's32[1]{0}', space=sflag, size = 0x4, scoped, tag = 'scoped memory for tpu_custom_call.1']
    #allocation8 [shape = 'u8[512]{0}', space=vmem, size = 0x400, scoped, tag = 'input window, operand 2, single buffered']
    #allocation9 [shape = 'u8[8192]{0}', space=vmem, size = 0x2000, scoped, tag = 'input window, operand 3, single buffered']
    #allocation10 [shape = 's32[1]{0}', space=sflag, size = 0x4, scoped, tag = 'scoped memory for tpu_custom_call.1']
    #allocation11 [shape = 'u8[2048]{0}', space=vmem, size = 0x800, scoped, tag = 'input window, operand 4, single buffered']
    #allocation12 [shape = 'u8[8192]{0}', space=vmem, size = 0x2000, scoped, tag = 'output window, operand 0, single buffered']
    %10 = vsyncpa [#allocation4], 0
    %11 = vsyncpa [#allocation7], 0
    %12 = vsyncpa [#allocation10], 0
    %13 = vsyncpa [#allocation5], 0
    // Predicated region
    $region2: #{tpu_custom_call.1} parent=1 // pred_check
      _
    $region3: #{tpu_custom_call.1} parent=1 // pred_check_branch
      %15 = sbr.rel (0) target = $region5
    $region4: #{tpu_custom_call.1} parent=1 // pred_region
      %s17 = ssub.s32 256, 256
      %18 = vsyncadd [#allocation4], %s17
      %s19 = sshll.u32 [#allocation3], 4
      %s20 = int_to_ptr.vmem [resolvable:$true] %s19
      %25 = dma.hbm_to_vmem [thread:$0]  %s0, 256, %s20, [#allocation4], 128, 128, 8
    $region5: #{tpu_custom_call.1} parent=1 // pred_fallthru
      _
    // Predicated region
    $region6: #{tpu_custom_call.1} parent=1 // pred_check
      _
    $region7: #{tpu_custom_call.1} parent=1 // pred_check_branch
      %27 = sbr.rel (0) target = $region9
    $region8: #{tpu_custom_call.1} parent=1 // pred_region
      %s29 = ssub.s32 2048, 2048
      %30 = vsyncadd [#allocation7], %s29
      %s31 = sshll.u32 [#allocation6], 4
      %s32 = int_to_ptr.vmem [resolvable:$true] %s31
      %37 = dma.hbm_to_vmem [thread:$0]  %s1, 2048, %s32, [#allocation7], 128, 128, 8
    $region9: #{tpu_custom_call.1} parent=1 // pred_fallthru
      _
    // Predicated region
    $region10: #{tpu_custom_call.1} parent=1 // pred_check
      _
    $region11: #{tpu_custom_call.1} parent=1 // pred_check_branch
      %39 = sbr.rel (0) target = $region13
    $region12: #{tpu_custom_call.1} parent=1 // pred_region
      %s41 = ssub.s32 16, 16
      %42 = vsyncadd [#allocation7], %s41
      %s44 = sshll.u32 [#allocation8], 4
      %s45 = int_to_ptr.vmem [resolvable:$true] %s44
      %47 = dma.hbm_to_vmem [thread:$0]  %s2, 16, %s45, [#allocation7]
    $region13: #{tpu_custom_call.1} parent=1 // pred_fallthru
      _
    // Predicated region
    $region14: #{tpu_custom_call.1} parent=1 // pred_check
      _
    $region15: #{tpu_custom_call.1} parent=1 // pred_check_branch
      %49 = sbr.rel (0) target = $region17
    $region16: #{tpu_custom_call.1} parent=1 // pred_region
      %s51 = ssub.s32 256, 256
      %52 = vsyncadd [#allocation10], %s51
      %s53 = sshll.u32 [#allocation9], 4
      %s54 = int_to_ptr.vmem [resolvable:$true] %s53
      %59 = dma.hbm_to_vmem [thread:$0]  %s3, 256, %s54, [#allocation10], 128, 128, 8
    $region17: #{tpu_custom_call.1} parent=1 // pred_fallthru
      _
    // Predicated region
    $region18: #{tpu_custom_call.1} parent=1 // pred_check
      _
    $region19: #{tpu_custom_call.1} parent=1 // pred_check_branch
      %61 = sbr.rel (0) target = $region21
    $region20: #{tpu_custom_call.1} parent=1 // pred_region
      %s63 = ssub.s32 64, 64
      %64 = vsyncadd [#allocation10], %s63
      %s66 = sshll.u32 [#allocation11], 4
      %s67 = int_to_ptr.vmem [resolvable:$true] %s66
      %69 = dma.hbm_to_vmem [thread:$0]  %s4, 64, %s67, [#allocation10]
    $region21: #{tpu_custom_call.1} parent=1 // pred_fallthru
      _
    // Predicated region
    $region22: #{tpu_custom_call.1} parent=1 // pred_check
      _
    $region23: #{tpu_custom_call.1} parent=1 // pred_check_branch
      %71 = sbr.rel (0) target = $region25
    $region24: #{tpu_custom_call.1} parent=1 // pred_region
      %72 = dma.done [#allocation4], 256
    $region25: #{tpu_custom_call.1} parent=1 // pred_fallthru
      _
    // Predicated region
    $region26: #{tpu_custom_call.1} parent=1 // pred_check
      _
    $region27: #{tpu_custom_call.1} parent=1 // pred_check_branch
      %74 = sbr.rel (0) target = $region29
    $region28: #{tpu_custom_call.1} parent=1 // pred_region
      %75 = dma.done [#allocation7], 2048
    $region29: #{tpu_custom_call.1} parent=1 // pred_fallthru
      _
    // Predicated region
    $region30: #{tpu_custom_call.1} parent=1 // pred_check
      _
    $region31: #{tpu_custom_call.1} parent=1 // pred_check_branch
      %77 = sbr.rel (0) target = $region33
    $region32: #{tpu_custom_call.1} parent=1 // pred_region
      %78 = dma.done [#allocation7], 16
    $region33: #{tpu_custom_call.1} parent=1 // pred_fallthru
      _
    // Predicated region
    $region34: #{tpu_custom_call.1} parent=1 // pred_check
      _
    $region35: #{tpu_custom_call.1} parent=1 // pred_check_branch
      %80 = sbr.rel (0) target = $region37
    $region36: #{tpu_custom_call.1} parent=1 // pred_region
      %81 = dma.done [#allocation10], 256
    $region37: #{tpu_custom_call.1} parent=1 // pred_fallthru
      _
    // Predicated region
    $region38: #{tpu_custom_call.1} parent=1 // pred_check
      _
    $region39: #{tpu_custom_call.1} parent=1 // pred_check_branch
      %83 = sbr.rel (0) target = $region41
    $region40: #{tpu_custom_call.1} parent=1 // pred_region
      %84 = dma.done [#allocation10], 64
    $region41: #{tpu_custom_call.1} parent=1 // pred_fallthru
      _
    %p85 = scmp.eq.s32.totalorder 0, 0
    // Predicated region
    $region42: #{tpu_custom_call.1} parent=1 // pred_check
      %p86 = pneg %p85
    $region43: #{tpu_custom_call.1} parent=1 // pred_check_branch
      %88 = sbr.rel (%p86) target = $region45
    $region44: #{tpu_custom_call.1} parent=1 // pred_region
      %89 = vst [vmem:[#allocation2] sm:$0xff] 0.0
      %90 = vst [vmem:[#allocation2 + $0x8] sm:$0xff] 0.0
    $region45: #{tpu_custom_call.1} parent=1 // pred_fallthru
      _
    %v91 = vld [vmem:[#allocation2] sm:$0xff]
    %v92 = vld [vmem:[#allocation2 + $0x8] sm:$0xff]
    %v93 = vld [vmem:[#allocation3] sm:$0xff]
    %v94 = vld [vmem:[#allocation3 + $0x8] sm:$0xff]
    %v95 = vld [vmem:[#allocation6] sm:$0xff]
    %v96 = vld [vmem:[#allocation6 + $0x8] sm:$0xff]
    %v97 = vld [vmem:[#allocation6 + $0x10] sm:$0xff]
    %v98 = vld [vmem:[#allocation6 + $0x18] sm:$0xff]
    %v99 = vld [vmem:[#allocation6 + $0x20] sm:$0xff]
    %v100 = vld [vmem:[#allocation6 + $0x28] sm:$0xff]
    %v101 = vld [vmem:[#allocation6 + $0x30] sm:$0xff]
    %v102 = vld [vmem:[#allocation6 + $0x38] sm:$0xff]
    %v103 = vld [vmem:[#allocation6 + $0x40] sm:$0xff]
    %v104 = vld [vmem:[#allocation6 + $0x48] sm:$0xff]
    %v105 = vld [vmem:[#allocation6 + $0x50] sm:$0xff]
    %v106 = vld [vmem:[#allocation6 + $0x58] sm:$0xff]
    %v107 = vld [vmem:[#allocation6 + $0x60] sm:$0xff]
    %v108 = vld [vmem:[#allocation6 + $0x68] sm:$0xff]
    %v109 = vld [vmem:[#allocation6 + $0x70] sm:$0xff]
    %v110 = vld [vmem:[#allocation6 + $0x78] sm:$0xff]
    %111 = vmatprep.subr.mxu0 0.0
    %112 = vmatpush1.msra.mxu0 %v95
    %113 = vmatprep.subr.mxu0 0.0
    %114 = vmatpush1.msra.mxu0 %v96
    %115 = vmatprep.subr.mxu0 0.0
    %116 = vmatpush1.msra.mxu0 %v97
    %117 = vmatprep.subr.mxu0 0.0
    %118 = vmatpush1.msra.mxu0 %v98
    %119 = vmatprep.subr.mxu0 0.0
    %120 = vmatpush1.msra.mxu0 %v99
    %121 = vmatprep.subr.mxu0 0.0
    %122 = vmatpush1.msra.mxu0 %v100
    %123 = vmatprep.subr.mxu0 0.0
    %124 = vmatpush1.msra.mxu0 %v101
    %125 = vmatprep.subr.mxu0 0.0
    %126 = vmatpush1.msra.mxu0 %v102
    %127 = vmatprep.subr.mxu0 0.0
    %128 = vmatpush1.msra.mxu0 %v103
    %129 = vmatprep.subr.mxu0 0.0
    %130 = vmatpush1.msra.mxu0 %v104
    %131 = vmatprep.subr.mxu0 0.0
    %132 = vmatpush1.msra.mxu0 %v105
    %133 = vmatprep.subr.mxu0 0.0
    %134 = vmatpush1.msra.mxu0 %v106
    %135 = vmatprep.subr.mxu0 0.0
    %136 = vmatpush1.msra.mxu0 %v107
    %137 = vmatprep.subr.mxu0 0.0
    %138 = vmatpush1.msra.mxu0 %v108
    %139 = vmatprep.subr.mxu0 0.0
    %140 = vmatpush1.msra.mxu0 %v109
    %141 = vmatprep.subr.mxu0 0.0
    %142 = vmatpush1.msra.mxu0 %v110
    %143 = vmatprep.subr.mxu0 0.0
    %144 = vmatpush1.msra.mxu0 0.0
    %145 = vmatprep.subr.mxu0 0.0
    %146 = vmatpush1.msra.mxu0 0.0
    %147 = vmatprep.subr.mxu0 0.0
    %148 = vmatpush1.msra.mxu0 0.0
    %149 = vmatprep.subr.mxu0 0.0
    %150 = vmatpush1.msra.mxu0 0.0
    %151 = vmatprep.subr.mxu0 0.0
    %152 = vmatpush1.msra.mxu0 0.0
    %153 = vmatprep.subr.mxu0 0.0
    %154 = vmatpush1.msra.mxu0 0.0
    %155 = vmatprep.subr.mxu0 0.0
    %156 = vmatpush1.msra.mxu0 0.0
    %157 = vmatprep.subr.mxu0 0.0
    %158 = vmatpush1.msra.mxu0 0.0
    %159 = vmatprep.subr.mxu0 0.0
    %160 = vmatpush1.msra.mxu0 0.0
    %161 = vmatprep.subr.mxu0 0.0
    %162 = vmatpush1.msra.mxu0 0.0
    %163 = vmatprep.subr.mxu0 0.0
    %164 = vmatpush1.msra.mxu0 0.0
    %165 = vmatprep.subr.mxu0 0.0
    %166 = vmatpush1.msra.mxu0 0.0
    %167 = vmatprep.subr.mxu0 0.0
    %168 = vmatpush1.msra.mxu0 0.0
    %169 = vmatprep.subr.mxu0 0.0
    %170 = vmatpush1.msra.mxu0 0.0
    %171 = vmatprep.subr.mxu0 0.0
    %172 = vmatpush1.msra.mxu0 0.0
    %173 = vmatprep.subr.mxu0 0.0
    %174 = vmatpush1.msra.mxu0 0.0
    %175 = vmatprep.mubr.f32.mxu0 0.0
    %176 = vmatmul.mubr.f32.gmra.mrb[0].mxu0 %v93
    %v177 = vpop.f32.mrb[0].mxu0
    %v178 = vadd.f32 0.0, %v177
    %v179 = vpop.f32.mrb[0].mxu0
    %180 = vmatprep.mubr.f32.mxu0 0.0
    %181 = vmatmul.mubr.f32.gmra.mrb[0].mxu0 %v94
    %v182 = vpop.f32.mrb[0].mxu0
    %v183 = vadd.f32 0.0, %v182
    %v184 = vpop.f32.mrb[0].mxu0
    %185 = vdwg.mxu0
    %v186 = vadd.f32 %v91, %v178
    %v187 = vadd.f32 %v92, %v183
    %188 = vst [vmem:[#allocation2] sm:$0xff] %v186
    %189 = vst [vmem:[#allocation2 + $0x8] sm:$0xff] %v187
    // Predicated region
    $region46: #{tpu_custom_call.1} parent=1 // pred_check
      %p190 = pneg %p85
    $region47: #{tpu_custom_call.1} parent=1 // pred_check_branch
      %192 = sbr.rel (%p190) target = $region49
    $region48: #{tpu_custom_call.1} parent=1 // pred_region
      %v193 = vld [vmem:[#allocation9] sm:$0xff]
      %v194 = vld [vmem:[#allocation9 + $0x8] sm:$0xff]
      %v195 = vld [vmem:[#allocation11] sm:$0xf]
      %vm196 = vcmask 31744
      %v198 = vsel %vm196, %v193, 0
      %v201 = vsel %vm196, %v194, 0
      %vm203 = vcmask 1043456
      %v205 = vsel %vm203, %v195, 0
      %207 = vmatprep.subr.mxu0 0.0
      %208 = vmatpush1.msra.mxu0 %v205
      %209 = vmatprep.subr.mxu0 0.0
      %210 = vmatpush1.msra.mxu0 0.0
      %211 = vmatprep.subr.mxu0 0.0
      %212 = vmatpush1.msra.mxu0 0.0
      %213 = vmatprep.subr.mxu0 0.0
      %214 = vmatpush1.msra.mxu0 0.0
      %215 = vmatprep.subr.mxu0 0.0
      %216 = vmatpush1.msra.mxu0 0.0
      %217 = vmatprep.subr.mxu0 0.0
      %218 = vmatpush1.msra.mxu0 0.0
      %219 = vmatprep.subr.mxu0 0.0
      %220 = vmatpush1.msra.mxu0 0.0
      %221 = vmatprep.subr.mxu0 0.0
      %222 = vmatpush1.msra.mxu0 0.0
      %223 = vmatprep.subr.mxu0 0.0
      %224 = vmatpush1.msra.mxu0 0.0
      %225 = vmatprep.subr.mxu0 0.0
      %226 = vmatpush1.msra.mxu0 0.0
      %227 = vmatprep.subr.mxu0 0.0
      %228 = vmatpush1.msra.mxu0 0.0
      %229 = vmatprep.subr.mxu0 0.0
      %230 = vmatpush1.msra.mxu0 0.0
      %231 = vmatprep.subr.mxu0 0.0
      %232 = vmatpush1.msra.mxu0 0.0
      %233 = vmatprep.subr.mxu0 0.0
      %234 = vmatpush1.msra.mxu0 0.0
      %235 = vmatprep.subr.mxu0 0.0
      %236 = vmatpush1.msra.mxu0 0.0
      %237 = vmatprep.subr.mxu0 0.0
      %238 = vmatpush1.msra.mxu0 0.0
      %239 = vmatprep.subr.mxu0 0.0
      %240 = vmatpush1.msra.mxu0 0.0
      %241 = vmatprep.subr.mxu0 0.0
      %242 = vmatpush1.msra.mxu0 0.0
      %243 = vmatprep.subr.mxu0 0.0
      %244 = vmatpush1.msra.mxu0 0.0
      %245 = vmatprep.subr.mxu0 0.0
      %246 = vmatpush1.msra.mxu0 0.0
      %247 = vmatprep.subr.mxu0 0.0
      %248 = vmatpush1.msra.mxu0 0.0
      %249 = vmatprep.subr.mxu0 0.0
      %250 = vmatpush1.msra.mxu0 0.0
      %251 = vmatprep.subr.mxu0 0.0
      %252 = vmatpush1.msra.mxu0 0.0
      %253 = vmatprep.subr.mxu0 0.0
      %254 = vmatpush1.msra.mxu0 0.0
      %255 = vmatprep.subr.mxu0 0.0
      %256 = vmatpush1.msra.mxu0 0.0
      %257 = vmatprep.subr.mxu0 0.0
      %258 = vmatpush1.msra.mxu0 0.0
      %259 = vmatprep.subr.mxu0 0.0
      %260 = vmatpush1.msra.mxu0 0.0
      %261 = vmatprep.subr.mxu0 0.0
      %262 = vmatpush1.msra.mxu0 0.0
      %263 = vmatprep.subr.mxu0 0.0
      %264 = vmatpush1.msra.mxu0 0.0
      %265 = vmatprep.subr.mxu0 0.0
      %266 = vmatpush1.msra.mxu0 0.0
      %267 = vmatprep.subr.mxu0 0.0
      %268 = vmatpush1.msra.mxu0 0.0
      %269 = vmatprep.subr.mxu0 0.0
      %270 = vmatpush1.msra.mxu0 0.0
      %271 = vmatprep.mubr.f32.mxu0 0.0
      %272 = vmatmul.mubr.f32.gmra.mrb[0].mxu0 %v198
      %v273 = vpop.f32.mrb[0].mxu0
      %v274 = vadd.f32 0.0, %v273
      %v275 = vpop.f32.mrb[0].mxu0
      %276 = vmatprep.mubr.f32.mxu0 0.0
      %277 = vmatmul.mubr.f32.gmra.mrb[0].mxu0 %v201
      %v278 = vpop.f32.mrb[0].mxu0
      %v279 = vadd.f32 0.0, %v278
      %v280 = vpop.f32.mrb[0].mxu0
      %281 = vdwg.mxu0
      %v282 = vld [vmem:[#allocation2] sm:$0xff]
      %v283 = vld [vmem:[#allocation2 + $0x8] sm:$0xff]
      %v284 = vld [vmem:[#allocation8] sm:$0x1]
      %v286 = vlaneseq
      %v287 = vshrl.u32 %v286, 7
      %v288 = vsub.s32 0, %v287
      %v289 = vrot.slane %v284, %v288
      %v291 = vadd.f32 %v282, %v289
      %v292 = vadd.f32 %v283, %v289
      %v293 = vadd.f32 %v291, %v274
      %v294 = vadd.f32 %v292, %v279
      %295 = vst [vmem:[#allocation12] sm:$0xff] %v293
      %296 = vst [vmem:[#allocation12 + $0x8] sm:$0xff] %v294
    $region49: #{tpu_custom_call.1} parent=1 // pred_fallthru
      _
    // Predicated region
    $region50: #{tpu_custom_call.1} parent=1 // pred_check
      _
    $region51: #{tpu_custom_call.1} parent=1 // pred_check_branch
      %298 = sbr.rel (0) target = $region53
    $region52: #{tpu_custom_call.1} parent=1 // pred_region
      %s300 = ssub.s32 256, 256
      %301 = vsyncadd [#allocation5], %s300
      %s302 = sshll.u32 [#allocation12], 4
      %s303 = int_to_ptr.vmem [resolvable:$true] %s302
      %308 = dma.vmem_to_hbm [thread:$0]  %s303, 256, %s5, [#allocation5], 128, 128, 8
    $region53: #{tpu_custom_call.1} parent=1 // pred_fallthru
      _
    // Predicated region
    $region54: #{tpu_custom_call.1} parent=1 // pred_check
      _
    $region55: #{tpu_custom_call.1} parent=1 // pred_check_branch
      %310 = sbr.rel (0) target = $region57
    $region56: #{tpu_custom_call.1} parent=1 // pred_region
      %311 = dma.done [#allocation5], 256
    $region57: #{tpu_custom_call.1} parent=1 // pred_fallthru
      _
    %312 = vsyncpa [#allocation4], 1
    %313 = vsyncpa [#allocation7], 1
    %314 = vsyncpa [#allocation10], 1
    %315 = vsyncpa [#allocation5], 1

</llo_original>
